<compile_context>
chip_gen: v7x
topology: tpu7x:2x2x1
jax: 0.10.0
libtpu: 0.0.40
codegen_flags: <defaults>
</compile_context>

<pallas_src>
import functools

import jax
import jax.numpy as jnp
from jax.experimental import pallas as pl
from jax.experimental.pallas import tpu as pltpu

_VMEM_LIMIT = 32 * 1024 * 1024  # explicit scoped-VMEM budget (safe on v5e/v6e/v7x)


def _round_up(x, m):
    return ((x + m - 1) // m) * m


def _apply_act(y, act):
    if act == "relu":
        return jnp.maximum(y, 0.0)
    if act == "leaky":
        return jnp.where(y >= 0, y, 0.2 * y)
    return y


# ----------------------------------------------------------------------------
# Pallas kernel 1: bf16 MXU matmul with fused bias + activation epilogue.
#   - A/B are bf16, accumulation and bias are f32.
#   - N is lane-padded to 128 for the MXU only; the HBM output stays N wide
#     (the kernel slices the padded lanes off before the store).
#   - K and N are kept as full-extent blocks (no K/N padding of the big A
#     operand); only M is padded to the row tile.
# ----------------------------------------------------------------------------
def _matmul_kernel(a_ref, b_ref, bias_ref, o_ref, *, act):
    y = jnp.dot(a_ref[...], b_ref[...], preferred_element_type=jnp.float32)
    y = _apply_act(y + bias_ref[...], act)
    o_ref[...] = y[:, :o_ref.shape[1]].astype(o_ref.dtype)


def _matmul_core(a, b, bias, act, out_dtype):
    """a: (M,K), b: (K,N), bias: (N,).  Returns (M,N) in out_dtype."""
    M, K = a.shape
    N = b.shape[1]
    Np = _round_up(N, 128)
    a = a.astype(jnp.bfloat16)
    b_p = jnp.pad(b.astype(jnp.bfloat16), ((0, 0), (0, Np - N)))
    bias_p = jnp.pad(bias.astype(jnp.float32), (0, Np - N)).reshape(1, Np)
    tm = min(512 if K <= 2048 else 256, _round_up(M, 16))
    Mp = _round_up(M, tm)
    if Mp != M:
        a = jnp.pad(a, ((0, Mp - M), (0, 0)))
    out = pl.pallas_call(
        functools.partial(_matmul_kernel, act=act),
        out_shape=jax.ShapeDtypeStruct((Mp, N), out_dtype),
        grid_spec=pltpu.PrefetchScalarGridSpec(
            num_scalar_prefetch=0,
            grid=(Mp // tm,),
            in_specs=[
                pl.BlockSpec((tm, K), lambda i: (i, 0)),
                pl.BlockSpec((K, Np), lambda i: (0, 0)),
                pl.BlockSpec((1, Np), lambda i: (0, 0)),
            ],
            out_specs=pl.BlockSpec((tm, N), lambda i: (i, 0)),
        ),
        compiler_params=pltpu.CompilerParams(
            dimension_semantics=("parallel",),
            vmem_limit_bytes=_VMEM_LIMIT),
    )(a, b_p, bias_p)
    return out[:M] if Mp != M else out


# ----------------------------------------------------------------------------
# Pallas kernel 2: fused depthwise k*k ('same', stride 1) + pointwise 1x1.
#
# The spatially padded image is flattened row-major with row width
# row_w = W + 2p; then tap (dy,dx) of the depthwise conv is just the flat
# shift dy*row_w + dx, so the whole k*k accumulation is k^2 in-VMEM shifted
# FMAs over one (SL, C) slab.  The accumulated (TN, C) tile is then fed to
# the MXU (bf16) for the 1x1 pointwise conv with bias/act fused.
# ----------------------------------------------------------------------------
def _dwpw_kernel(x_ref, dww_ref, pww_ref, bias_ref, o_ref, acc_ref, *,
                 k, row_w, act):
    TN = acc_ref.shape[0]
    dww = dww_ref[...]                                    # (k*k, C) f32
    for dy in range(k):
        base = dy * row_w
        t0 = dy * k
        row = (x_ref[pl.ds(base, TN), :].astype(jnp.float32)
               * dww[t0:t0 + 1, :])
        for dx in range(1, k):
            t = t0 + dx
            row = row + (x_ref[pl.ds(base + dx, TN), :].astype(jnp.float32)
                         * dww[t:t + 1, :])
        if dy == 0:
            acc_ref[...] = row
        else:
            acc_ref[...] += row
    y = jnp.dot(acc_ref[...].astype(jnp.bfloat16), pww_ref[...],
                preferred_element_type=jnp.float32)
    y = _apply_act(y + bias_ref[...], act)
    o_ref[...] = y[:, :o_ref.shape[1]].astype(o_ref.dtype)


def _pick_tile(n_out, c, cout):
    # rough per-flat-row VMEM cost: slab bf16 (double buffered) + f32 acc + out
    per_row = 6 * c + 4 * max(cout, 128) + 16
    tn = (6 * 1024 * 1024) // per_row
    tn = max(256, min(tn, 8192))
    tn = (tn // 16) * 16
    return min(tn, _round_up(n_out, 16))


@functools.partial(jax.jit, static_argnames=("k", "act", "out_dtype"))
def _fused_dwpw(x, dw_w, dw_b, pw_w, pw_b, *, k, act, out_dtype):
    """Depthwise k*k (stride 1, 'same') + pointwise 1x1, one pallas_call."""
    B, H, W, C = x.shape
    Cout = pw_w.shape[1]
    Ncp = _round_up(Cout, 128)                 # MXU lane padding only
    p = (k - 1) // 2
    row_w = W + 2 * p

    xp = jnp.pad(x.astype(jnp.bfloat16), ((0, 0), (p, p), (p, p), (0, 0)))
    xflat = xp.reshape(B, (H + 2 * p) * row_w, C)

    n_out = H * row_w                          # last 2p entries per row unused
    halo = (k - 1) * row_w + (k - 1)
    TN = _pick_tile(n_out, C, Cout)
    NT = -(-n_out // TN)
    n_out_p = NT * TN
    SL = _round_up(TN + halo, 16)
    flat_need = (NT - 1) * TN + SL
    xflat = jnp.pad(xflat, ((0, 0), (0, flat_need - xflat.shape[1]), (0, 0)))
    if NT == 1:
        xs = xflat[:, None]                    # (B, 1, SL, C) -- no gather
    else:                                      # overlapping slabs, tiny halo dup
        idx = (jnp.arange(NT) * TN)[:, None] + jnp.arange(SL)[None, :]
        xs = xflat[:, idx, :]                  # (B, NT, SL, C)

    pw_p = jnp.pad(pw_w.astype(jnp.bfloat16), ((0, 0), (0, Ncp - Cout)))
    bias = dw_b.astype(jnp.float32) @ pw_w.astype(jnp.float32) + pw_b
    bias_p = jnp.pad(bias.astype(jnp.float32), (0, Ncp - Cout)).reshape(1, Ncp)

    out = pl.pallas_call(
        functools.partial(_dwpw_kernel, k=k, row_w=row_w, act=act),
        out_shape=jax.ShapeDtypeStruct((B, n_out_p, Cout), out_dtype),
        grid_spec=pltpu.PrefetchScalarGridSpec(
            num_scalar_prefetch=0,
            grid=(B, NT),
            in_specs=[
                pl.BlockSpec((None, None, SL, C), lambda b, i: (b, i, 0, 0)),
                pl.BlockSpec((k * k, C), lambda b, i: (0, 0)),
                pl.BlockSpec((C, Ncp), lambda b, i: (0, 0)),
                pl.BlockSpec((1, Ncp), lambda b, i: (0, 0)),
            ],
            out_specs=pl.BlockSpec((None, TN, Cout), lambda b, i: (b, i, 0)),
            scratch_shapes=[pltpu.VMEM((TN, C), jnp.float32)],
        ),
        compiler_params=pltpu.CompilerParams(
            dimension_semantics=("parallel", "parallel"),
            vmem_limit_bytes=_VMEM_LIMIT),
    )(xs, dw_w.astype(jnp.float32), pw_p, bias_p)
    out = out[:, :n_out].reshape(B, H, row_w, Cout)[:, :, :W, :]
    return out


# ----------------------------------------------------------------------------
# Conv wrappers built on the two Pallas kernels.
# ----------------------------------------------------------------------------
def _dense_conv_impl(x, w_mat, bias, k, stride, padding, act, out_dtype):
    # im2col (glue) + Pallas matmul.  Patch layout: (dy, dx, cin).
    # TODO(synk): the im2col patches are still materialized in HBM; an
    # implicit-GEMM BlockSpec formulation would avoid this for the few
    # dense/strided/transposed convs that still use this path.
    x = x.astype(jnp.bfloat16)
    B, H, W, C = x.shape
    xp = jnp.pad(x, ((0, 0), (padding, padding), (padding, padding), (0, 0)))
    Ho = (H + 2 * padding - k) // stride + 1
    Wo = (W + 2 * padding - k) // stride + 1
    cols = []
    for dy in range(k):
        for dx in range(k):
            cols.append(xp[:, dy:dy + (Ho - 1) * stride + 1:stride,
                           dx:dx + (Wo - 1) * stride + 1:stride, :])
    pat = jnp.concatenate(cols, axis=-1).reshape(B * Ho * Wo, k * k * C)
    y = _matmul_core(pat, w_mat, bias, act, out_dtype)
    return y.reshape(B, Ho, Wo, -1)


_dense_conv = functools.partial(jax.jit, static_argnames=(
    "k", "stride", "padding", "act", "out_dtype"))(_dense_conv_impl)


@functools.partial(jax.jit, static_argnames=("k", "stride", "padding",
                                             "output_padding", "act",
                                             "out_dtype"))
def _conv_transpose(x, w_mat, bias, *, k, stride, padding, output_padding,
                    act, out_dtype):
    # ConvTranspose2d == zero-dilate input, pad by (k-1-padding) (+ output
    # padding on bottom/right), correlate with the flipped kernel (the flip /
    # channel swap is folded into w_mat at init).
    x = x.astype(jnp.bfloat16)
    B, H, W, C = x.shape
    Hd, Wd = (H - 1) * stride + 1, (W - 1) * stride + 1
    xd = jnp.zeros((B, Hd, Wd, C), x.dtype).at[:, ::stride, ::stride, :].set(x)
    e = k - 1 - padding
    xd = jnp.pad(xd, ((0, 0), (e, e + output_padding),
                      (e, e + output_padding), (0, 0)))
    return _dense_conv_impl(xd, w_mat, bias, k, 1, 0, act, out_dtype)


@functools.partial(jax.jit, static_argnames=("k", "stride", "act", "out_dtype"))
def _dp_as_dense(x, dw_w, dw_b, pw_w, pw_b, *, k, stride, act, out_dtype):
    # Tiny-channel (or strided) depthwise+pointwise folded into ONE dense conv:
    # W[(dy,dx,ci),co] = dw_w[tap,ci]*pw_w[ci,co];  b = dw_b @ pw_w + pw_b.
    # Avoids padding 1..3 channels to 128 lanes in a depthwise kernel.
    C = dw_w.shape[1]
    cout = pw_w.shape[1]
    w = (dw_w[:, :, None] * pw_w[None, :, :]).reshape(k * k * C, cout)
    b = dw_b @ pw_w + pw_b
    return _dense_conv_impl(x, w, b, k, stride, (k - 1) // 2, act, out_dtype)


def apply_conv_dp(p, x, stride=1, act="none", out_dtype=jnp.bfloat16):
    k = p["k"]
    C = x.shape[-1]
    if C <= 8 or stride > 1:
        return _dp_as_dense(x, p["dw_w"], p["dw_b"], p["pw_w"], p["pw_b"],
                            k=k, stride=stride, act=act, out_dtype=out_dtype)
    return _fused_dwpw(x, p["dw_w"], p["dw_b"], p["pw_w"], p["pw_b"],
                       k=k, act=act, out_dtype=out_dtype)


def apply_dense(p, x, act="none", out_dtype=jnp.bfloat16):
    return _dense_conv(x, p["w"], p["b"], k=p["k"], stride=p["stride"],
                       padding=(p["k"] - 1) // 2, act=act, out_dtype=out_dtype)


def apply_convt(p, x):
    return _conv_transpose(x, p["w"], p["b"], k=p["k"], stride=2, padding=1,
                           output_padding=1, act="leaky",
                           out_dtype=jnp.bfloat16)


# ----------------------------------------------------------------------------
# Non-conv glue: bicubic resize (PyTorch semantics, a=-0.75, half-pixel,
# align_corners=False, clamped borders) and 2x2 max-pool.
# ----------------------------------------------------------------------------
def _cubic_w(x, a=-0.75):
    ax = jnp.abs(x)
    ax2, ax3 = ax * ax, ax * ax * ax
    return jnp.where(ax <= 1.0, (a + 2) * ax3 - (a + 3) * ax2 + 1.0,
                     jnp.where(ax < 2.0,
                               a * ax3 - 5 * a * ax2 + 8 * a * ax - 4 * a,
                               0.0))


def _resize_axis(x, out_size, axis):
    in_size = x.shape[axis]
    if out_size == in_size:
        return x
    scale = in_size / out_size
    i = jnp.arange(out_size, dtype=jnp.float32)
    src = (i + 0.5) * scale - 0.5
    fl = jnp.floor(src)
    res = 0.0
    for off in (-1, 0, 1, 2):
        idx = jnp.clip(fl.astype(jnp.int32) + off, 0, in_size - 1)
        w = _cubic_w(src - (fl + off))
        shape = [1] * x.ndim
        shape[axis] = out_size
        res = res + jnp.take(x, idx, axis=axis) * w.reshape(shape)
    return res


def bicubic_resize(x, Ho, Wo):  # NHWC
    return _resize_axis(_resize_axis(x, Ho, 1), Wo, 2)


def maxpool2x2(x):  # NHWC
    B, H, W, C = x.shape
    return x.reshape(B, H // 2, 2, W // 2, 2, C).max(axis=(2, 4))


# ----------------------------------------------------------------------------
# Parameter initialization (deterministic; weights N(0, 0.001), biases zero,
# exactly mirroring init_weights()).
# ----------------------------------------------------------------------------
class _KeyGen:
    def __init__(self, key):
        self._key = key

    def __call__(self):
        self._key, sub = jax.random.split(self._key)
        return sub


def _randn(kg, shape):
    return jax.random.normal(kg(), shape, dtype=jnp.float32) * 1e-3


def init_conv_dp(kg, cin, cout, k):
    # depthwise k*k (groups=cin) + 1x1 pointwise.
    return {"k": k,
            "dw_w": _randn(kg, (k * k, cin)),
            "dw_b": jnp.zeros((cin,), jnp.float32),
            "pw_w": _randn(kg, (cin, cout)),
            "pw_b": jnp.zeros((cout,), jnp.float32)}


def init_dense(kg, cin, cout, k, stride):
    return {"k": k, "stride": stride,
            "w": _randn(kg, (k * k * cin, cout)),
            "b": jnp.zeros((cout,), jnp.float32)}


def init_convt(kg, cin, cout, k=3):
    # PyTorch ConvTranspose2d weight is (cin, cout, k, k); fold the spatial
    # flip + channel swap of the equivalent forward conv into a matmul matrix.
    w_t = _randn(kg, (cin, cout, k, k))
    w_mat = jnp.transpose(jnp.flip(w_t, axis=(2, 3)),
                          (2, 3, 0, 1)).reshape(k * k * cin, cout)
    return {"k": k, "w": w_mat, "b": jnp.zeros((cout,), jnp.float32)}


def init_resblock(kg, c, k):
    return {"conv1": init_conv_dp(kg, c, c, k),
            "conv2": init_conv_dp(kg, c, c, k)}


def init_resblock_ch(kg, cin, cout, stride, k):
    return {"conv1": init_conv_dp(kg, cin, cin, k),
            "conv2": init_conv_dp(kg, cin, cin, k),
            "ds": init_dense(kg, cin, cout, k, stride)}


# TODO(synk): `make_layer` is not defined in the provided source; inferred as
# ResBlock_CH(inplanes, planes, stride, kernel=3, dp) + (blocks-1) x
# ResBlock(planes, 3, dp), which matches the channel/stride bookkeeping that
# CompletionBlock.forward requires.
def init_make_layer(kg, cin, cout, blocks, stride):
    layers = [("ch", init_resblock_ch(kg, cin, cout, stride, 3))]
    for _ in range(blocks - 1):
        layers.append(("rb", init_resblock(kg, cout, 3)))
    return layers


def init_head(kg, outplanes):
    return {"rb": init_resblock(kg, 64, 3),
            "c1": init_conv_dp(kg, 64, 32, 3),
            "c2": init_conv_dp(kg, 32, outplanes, 3)}


def init_completion(kg, inplanes, outplanes):
    return {
        "enconv0_0": init_conv_dp(kg, inplanes, 32, 9),
        "enconv0_1": init_conv_dp(kg, 32, 64, 7),
        "enconv0_2": init_resblock(kg, 64, 3),
        "enconv1": init_make_layer(kg, 64, 128, 1, 2),
        "enconv2": init_make_layer(kg, 128, 256, 2, 2),
        "middle": init_resblock(kg, 256, 3),
        "SDconv0": init_resblock_ch(kg, 1, 32, 1, 7),
        "SDconv1": init_resblock_ch(kg, 32, 32, 1, 5),
        "SDconv2": init_resblock_ch(kg, 32, 64, 2, 3),
        "SDconv3": init_resblock_ch(kg, 64, 128, 2, 3),
        "RGBconv0": init_resblock_ch(kg, 3, 32, 1, 7),
        "RGBconv1": init_resblock_ch(kg, 32, 32, 1, 5),
        "RGBconv2": init_resblock_ch(kg, 32, 64, 2, 3),
        "RGBconv3": init_resblock_ch(kg, 64, 128, 2, 3),
        "deRes3": init_resblock(kg, 128, 3),
        "deRes2": init_resblock(kg, 64, 3),
        "mix1": init_conv_dp(kg, 64 + 32, 64, 3),
        "mix2": init_conv_dp(kg, 128 + 64, 128, 3),
        "mix3": init_conv_dp(kg, 256 + 128, 256, 3),
        "deconv3": init_convt(kg, 256 + 256 + 128, 128, 3),
        "deconv2": init_convt(kg, 256 + 64, 64, 3),
        "deconv1": init_conv_dp(kg, 128 + 32, 64, 3),
        "deconvS": init_head(kg, outplanes),
        "deconv0": init_head(kg, outplanes),
    }


def init_mdcnet(key):
    kg = _KeyGen(key)
    return {
        "encoder_1": init_completion(kg, 2, 1),
        "encoder_2": init_completion(kg, 2, 1),
        "encoder_3": init_completion(kg, 2, 1),
        "encoder_4": init_completion(kg, 2, 1),
        "dwnscale": [init_conv_dp(kg, 1, 1, 9),
                     init_conv_dp(kg, 1, 1, 7),
                     init_conv_dp(kg, 1, 1, 3)],
    }


# ----------------------------------------------------------------------------
# Functional modules.
# ----------------------------------------------------------------------------
def apply_resblock(p, x):
    h = apply_conv_dp(p["conv1"], x, act="relu")
    h = apply_conv_dp(p["conv2"], h, act="none")
    return h + x


def apply_resblock_ch(p, x):
    h = apply_conv_dp(p["conv1"], x, act="relu")
    h = apply_conv_dp(p["conv2"], h, act="none")
    h = h + x
    return apply_dense(p["ds"], h, act="none")


def apply_make_layer(layers, x):
    for kind, lp in layers:
        x = apply_resblock_ch(lp, x) if kind == "ch" else apply_resblock(lp, x)
    return x


def apply_head(p, x, last_act):
    h = apply_resblock(p["rb"], x)
    h = apply_conv_dp(p["c1"], h, act="none")
    # keep the final regression conv in f32 for output fidelity
    return apply_conv_dp(p["c2"], h, act=last_act, out_dtype=jnp.float32)


def apply_completion(p, x, rgb, sd):
    conv0_SD = apply_resblock_ch(p["SDconv0"], sd)
    conv1_SD = apply_resblock_ch(p["SDconv1"], conv0_SD)
    conv2_SD = apply_resblock_ch(p["SDconv2"], conv1_SD)
    conv3_SD = apply_resblock_ch(p["SDconv3"], conv2_SD)

    conv0_RGB = apply_resblock_ch(p["RGBconv0"], rgb)
    conv1_RGB = apply_resblock_ch(p["RGBconv1"], conv0_RGB)
    conv2_RGB = apply_resblock_ch(p["RGBconv2"], conv1_RGB)
    conv3_RGB = apply_resblock_ch(p["RGBconv3"], conv2_RGB)

    h = apply_conv_dp(p["enconv0_0"], x, act="none")
    h = apply_conv_dp(p["enconv0_1"], h, act="relu")
    conv0_en = apply_resblock(p["enconv0_2"], h)

    conv0_en_1 = apply_conv_dp(
        p["mix1"], jnp.concatenate([conv0_en, conv1_RGB], -1), act="none")
    conv2_en = apply_make_layer(p["enconv1"], conv0_en_1)
    conv2_en_1 = apply_conv_dp(
        p["mix2"], jnp.concatenate([conv2_en, conv2_SD], -1), act="none")
    conv3_en = apply_make_layer(p["enconv2"], conv2_en_1)
    conv3_en_1 = apply_conv_dp(
        p["mix3"], jnp.concatenate([conv3_en, conv3_RGB], -1), act="none")
    conv3_en_1 = apply_resblock(p["middle"], conv3_en_1)

    d3 = apply_convt(p["deconv3"],
                     jnp.concatenate([conv3_en_1, conv3_en, conv3_SD], -1))
    d3 = apply_resblock(p["deRes3"], d3)
    d2 = apply_convt(p["deconv2"],
                     jnp.concatenate([d3, conv2_en, conv2_RGB], -1))
    d2 = apply_resblock(p["deRes2"], d2)
    d1 = apply_conv_dp(p["deconv1"],
                       jnp.concatenate([d2, conv0_en, conv1_SD], -1),
                       act="none")
    out0 = apply_head(p["deconv0"], d1, last_act="none")
    outS = apply_head(p["deconvS"], d1, last_act="relu")
    return out0, outS


def mdcnet_forward(params, dep, rgb, training=False):
    """dep: (B,1,H,W), rgb: (B,3,H,W) NCHW (PyTorch convention)."""
    B, _, H, W = dep.shape
    dep_max = jnp.max(dep.reshape(B, -1), axis=1).reshape(B, 1, 1, 1)
    dep_nhwc = jnp.transpose(dep, (0, 2, 3, 1)).astype(jnp.float32)
    rgb_nhwc = jnp.transpose(rgb, (0, 2, 3, 1)).astype(jnp.float32)

    depn = dep_nhwc / (dep_max + 0.0001)
    dpth_1 = depn
    dpth_2 = maxpool2x2(dpth_1)
    dpth_4 = maxpool2x2(dpth_2)
    dpth_8 = maxpool2x2(dpth_4)

    rgb_1 = rgb_nhwc
    rgb_2 = bicubic_resize(rgb_1, H // 2, W // 2)
    rgb_4 = bicubic_resize(rgb_2, H // 4, W // 4)
    rgb_8 = bicubic_resize(rgb_4, H // 8, W // 8)

    # dwnscale acts on the *raw* (unnormalized) depth, as in the PyTorch code.
    h = dep_nhwc
    for cp in params["dwnscale"]:
        h = apply_conv_dp(cp, h, stride=2, act="none")
    dpth_8_conv = h

    out_1, s_1 = apply_completion(
        params["encoder_1"], jnp.concatenate([dpth_8_conv, dpth_8], -1),
        rgb_8, dpth_8)
    out_1_1 = bicubic_resize(out_1, out_1.shape[1] * 2, out_1.shape[2] * 2)
    out_2, s_2 = apply_completion(
        params["encoder_2"], jnp.concatenate([out_1_1, dpth_4], -1),
        rgb_4, dpth_4)
    out_2_1 = bicubic_resize(out_2, out_2.shape[1] * 2, out_2.shape[2] * 2)
    out_3, s_3 = apply_completion(
        params["encoder_3"], jnp.concatenate([out_2_1, dpth_2], -1),
        rgb_2, dpth_2)
    out_3_1 = bicubic_resize(out_3, out_3.shape[1] * 2, out_3.shape[2] * 2)
    out_4, s_4 = apply_completion(
        params["encoder_4"], jnp.concatenate([out_3_1, dpth_1], -1),
        rgb_1, dpth_1)

    to_nchw = lambda t: jnp.transpose(t, (0, 3, 1, 2))
    if training:
        return (to_nchw(out_1 * dep_max), to_nchw(out_2 * dep_max),
                to_nchw(out_3 * dep_max), to_nchw(out_4 * dep_max),
                to_nchw(s_1), to_nchw(s_2), to_nchw(s_3), to_nchw(s_4))
    return to_nchw(out_4 * dep_max), to_nchw(s_4)


if __name__ == "__main__":
    key = jax.random.PRNGKey(0)
    k_dep, k_rgb, k_par = jax.random.split(key, 3)

    # Smallest spatial size compatible with the /8 pyramid and the internal /4
    # encoder-decoder (needs H, W divisible by 32).
    B, H, W = 2, 32, 32
    dep = jax.random.uniform(k_dep, (B, 1, H, W), dtype=jnp.float32,
                             minval=0.0, maxval=10.0)
    rgb = jax.random.uniform(k_rgb, (B, 3, H, W), dtype=jnp.float32)

    params = init_mdcnet(k_par)
    out_4, s_4 = mdcnet_forward(params, dep, rgb, training=False)
    jax.block_until_ready((out_4, s_4))
    assert out_4.shape == (B, 1, H, W) and s_4.shape == (B, 1, H, W)
    print("KERNEL_OK")
</pallas_src>

<mosaic_0001>
module attributes {stable_mosaic.version = 11 : i64} {
  func.func @_matmul_kernel(%arg0: i32, %arg1: memref<512x81xbf16, #tpu.memory_space<vmem>>, %arg2: memref<81x128xbf16, #tpu.memory_space<vmem>>, %arg3: memref<1x128xf32, #tpu.memory_space<vmem>>, %arg4: memref<512x1xbf16, #tpu.memory_space<vmem>>) attributes {dimension_semantics = [#tpu.dimension_semantics<parallel>], iteration_bounds = array<i64: 1>, scalar_prefetch = 0 : i64, scratch_operands = 0 : i64, tpu.core_type = #tpu.core_type<tc>, window_params = [{transform_indices = @transform_0, window_bounds = array<i64: 512, 81>}, {pipeline_mode = #tpu.pipeline_mode<synchronous>, transform_indices = @transform_1, window_bounds = array<i64: 81, 128>}, {pipeline_mode = #tpu.pipeline_mode<synchronous>, transform_indices = @transform_2, window_bounds = array<i64: 1, 128>}, {transform_indices = @transform_3, window_bounds = array<i64: 512, 1>}]} {
    %c0 = arith.constant 0 : index
    %c0_0 = arith.constant 0 : index
    %0 = vector.load %arg1[%c0, %c0_0] : memref<512x81xbf16, #tpu.memory_space<vmem>>, vector<512x81xbf16>
    %c0_1 = arith.constant 0 : index
    %c0_2 = arith.constant 0 : index
    %1 = vector.load %arg2[%c0_1, %c0_2] : memref<81x128xbf16, #tpu.memory_space<vmem>>, vector<81x128xbf16>
    %cst = arith.constant dense<0.000000e+00> : vector<512x128xf32>
    %2 = tpu.matmul %0, %1, %cst {dimension_numbers = #tpu.dot_dimension_numbers<[1], [0], [0], [1], [0, 0, 1, 1], [], []>} : vector<512x81xbf16>, vector<81x128xbf16>, vector<512x128xf32> -> vector<512x128xf32>
    %c0_3 = arith.constant 0 : index
    %c0_4 = arith.constant 0 : index
    %3 = vector.load %arg3[%c0_3, %c0_4] : memref<1x128xf32, #tpu.memory_space<vmem>>, vector<1x128xf32>
    %4 = vector.broadcast %3 : vector<1x128xf32> to vector<512x128xf32>
    %5 = arith.addf %2, %4 : vector<512x128xf32>
    %6 = vector.extract_strided_slice %5 {offsets = [0, 0], sizes = [512, 1], strides = [1, 1]} : vector<512x128xf32> to vector<512x1xf32>
    %7 = arith.truncf %6 : vector<512x1xf32> to vector<512x1xbf16>
    %c0_5 = arith.constant 0 : index
    %c0_6 = arith.constant 0 : index
    %8 = vector.load %arg4[%c0_5, %c0_6] : memref<512x1xbf16, #tpu.memory_space<vmem>>, vector<512x1xbf16>
    tpu.vector_store %arg4[%c0_5, %c0_6], %7 {strides = array<i32>} : memref<512x1xbf16, #tpu.memory_space<vmem>>, vector<512x1xbf16>,
    return
  }
  func.func @transform_0(%arg0: i32) -> (i32, i32) {
    %c0_i32 = arith.constant 0 : i32
    %c0_i32_0 = arith.constant 0 : i32
    return %arg0, %c0_i32 : i32, i32
  }
  func.func @transform_1(%arg0: i32) -> (i32, i32) {
    %c0_i32 = arith.constant 0 : i32
    %c0_i32_0 = arith.constant 0 : i32
    %c0_i32_1 = arith.constant 0 : i32
    return %c0_i32, %c0_i32_0 : i32, i32
  }
  func.func @transform_2(%arg0: i32) -> (i32, i32) {
    %c0_i32 = arith.constant 0 : i32
    %c0_i32_0 = arith.constant 0 : i32
    %c0_i32_1 = arith.constant 0 : i32
    return %c0_i32, %c0_i32_0 : i32, i32
  }
  func.func @transform_3(%arg0: i32) -> (i32, i32) {
    %c0_i32 = arith.constant 0 : i32
    %c0_i32_0 = arith.constant 0 : i32
    return %arg0, %c0_i32 : i32, i32
  }
}

</mosaic_0001>

<llo_original>
// kernel: _dp_as_dense.1
$region0: #{_dp_as_dense.1}
  #allocation0 [shape = 'u32[]', space=smem, size = 0x4, offset = 0x4, fixed_abs, tag = 'smem constant byte address 0x4 - core index']
  #allocation1 [shape = 'u32[144,128]{1,0:T(1,128)}', space=vmem, size = 0x12000, scoped, tag = 'internal scratch']
  %s0 = inlined_call_operand.vmem [shape: bf16[512,81], index: 0, kind: input, shape index: {}]
  %s1 = inlined_call_operand.vmem [shape: bf16[81,128], index: 1, kind: input, shape index: {}]
  %s2 = inlined_call_operand.vmem [shape: f32[1,128], index: 2, kind: input, shape index: {}]
  %s3 = inlined_call_operand.vmem [shape: bf16[512,1], index: 3, kind: output, shape index: {}]
  %s4 = sld [smem:[#allocation0]]
  $region22: #{_dp_as_dense.1} parent=0
    _
  %s6 = ssub.s32 1, %s4
  %s7 = scalar_select 0, %s6, %s4
  // Predicated region
  $region2: #{_dp_as_dense.1} parent=0 // pred_check
    _
  $region3: #{_dp_as_dense.1} parent=0 // pred_check_branch
    %9 = sbr.rel (0) target = $region5
  $region4: #{_dp_as_dense.1} parent=0 // pred_region
    _
  $region5: #{_dp_as_dense.1} parent=0 // pred_fallthru
    _
  // Predicated region
  $region6: #{_dp_as_dense.1} parent=0 // pred_check
    _
  $region7: #{_dp_as_dense.1} parent=0 // pred_check_branch
    %11 = sbr.rel (0) target = $region9
  $region8: #{_dp_as_dense.1} parent=0 // pred_region
    _
  $region9: #{_dp_as_dense.1} parent=0 // pred_fallthru
    _
  // Predicated region
  $region10: #{_dp_as_dense.1} parent=0 // pred_check
    _
  $region11: #{_dp_as_dense.1} parent=0 // pred_check_branch
    %13 = sbr.rel (0) target = $region13
  $region12: #{_dp_as_dense.1} parent=0 // pred_region
    _
  $region13: #{_dp_as_dense.1} parent=0 // pred_fallthru
    _
  %v15 = vld [vmem:[%s0] sm:$0xf]
  %v16 = vld [vmem:[%s0 + $0x4] sm:$0xf]
  %v17 = vld [vmem:[%s0 + $0x8] sm:$0xf]
  %v18 = vld [vmem:[%s0 + $0xc] sm:$0xf]
  %v19 = vld [vmem:[%s0 + $0x10] sm:$0xf]
  %v20 = vld [vmem:[%s0 + $0x14] sm:$0xf]
  %v21 = vld [vmem:[%s0 + $0x18] sm:$0xf]
  %v22 = vld [vmem:[%s0 + $0x1c] sm:$0xf]
  %v23 = vld [vmem:[%s0 + $0x20] sm:$0xf]
  %v24 = vld [vmem:[%s0 + $0x24] sm:$0xf]
  %v25 = vld [vmem:[%s0 + $0x28] sm:$0xf]
  %v26 = vld [vmem:[%s0 + $0x2c] sm:$0xf]
  %v27 = vld [vmem:[%s0 + $0x30] sm:$0xf]
  %v28 = vld [vmem:[%s0 + $0x34] sm:$0xf]
  %v29 = vld [vmem:[%s0 + $0x38] sm:$0xf]
  %v30 = vld [vmem:[%s0 + $0x3c] sm:$0xf]
  %v31 = vld [vmem:[%s0 + $0x40] sm:$0xf]
  %v32 = vld [vmem:[%s0 + $0x44] sm:$0xf]
  %v33 = vld [vmem:[%s0 + $0x48] sm:$0xf]
  %v34 = vld [vmem:[%s0 + $0x4c] sm:$0xf]
  %v35 = vld [vmem:[%s0 + $0x50] sm:$0xf]
  %v36 = vld [vmem:[%s0 + $0x54] sm:$0xf]
  %v37 = vld [vmem:[%s0 + $0x58] sm:$0xf]
  %v38 = vld [vmem:[%s0 + $0x5c] sm:$0xf]
  %v39 = vld [vmem:[%s0 + $0x60] sm:$0xf]
  %v40 = vld [vmem:[%s0 + $0x64] sm:$0xf]
  %v41 = vld [vmem:[%s0 + $0x68] sm:$0xf]
  %v42 = vld [vmem:[%s0 + $0x6c] sm:$0xf]
  %v43 = vld [vmem:[%s0 + $0x70] sm:$0xf]
  %v44 = vld [vmem:[%s0 + $0x74] sm:$0xf]
  %v45 = vld [vmem:[%s0 + $0x78] sm:$0xf]
  %v46 = vld [vmem:[%s0 + $0x7c] sm:$0xf]
  %v47 = vld [vmem:[%s0 + $0x80] sm:$0xf]
  %v48 = vld [vmem:[%s0 + $0x84] sm:$0xf]
  %v49 = vld [vmem:[%s0 + $0x88] sm:$0xf]
  %v50 = vld [vmem:[%s0 + $0x8c] sm:$0xf]
  %v51 = vld [vmem:[%s0 + $0x90] sm:$0xf]
  %v52 = vld [vmem:[%s0 + $0x94] sm:$0xf]
  %v53 = vld [vmem:[%s0 + $0x98] sm:$0xf]
  %v54 = vld [vmem:[%s0 + $0x9c] sm:$0xf]
  %v55 = vld [vmem:[%s0 + $0xa0] sm:$0xf]
  %v56 = vld [vmem:[%s0 + $0xa4] sm:$0xf]
  %v57 = vld [vmem:[%s0 + $0xa8] sm:$0xf]
  %v58 = vld [vmem:[%s0 + $0xac] sm:$0xf]
  %v59 = vld [vmem:[%s0 + $0xb0] sm:$0xf]
  %v60 = vld [vmem:[%s0 + $0xb4] sm:$0xf]
  %v61 = vld [vmem:[%s0 + $0xb8] sm:$0xf]
  %v62 = vld [vmem:[%s0 + $0xbc] sm:$0xf]
  %v63 = vld [vmem:[%s0 + $0xc0] sm:$0xf]
  %v64 = vld [vmem:[%s0 + $0xc4] sm:$0xf]
  %v65 = vld [vmem:[%s0 + $0xc8] sm:$0xf]
  %v66 = vld [vmem:[%s0 + $0xcc] sm:$0xf]
  %v67 = vld [vmem:[%s0 + $0xd0] sm:$0xf]
  %v68 = vld [vmem:[%s0 + $0xd4] sm:$0xf]
  %v69 = vld [vmem:[%s0 + $0xd8] sm:$0xf]
  %v70 = vld [vmem:[%s0 + $0xdc] sm:$0xf]
  %v71 = vld [vmem:[%s0 + $0xe0] sm:$0xf]
  %v72 = vld [vmem:[%s0 + $0xe4] sm:$0xf]
  %v73 = vld [vmem:[%s0 + $0xe8] sm:$0xf]
  %v74 = vld [vmem:[%s0 + $0xec] sm:$0xf]
  %v75 = vld [vmem:[%s0 + $0xf0] sm:$0xf]
  %v76 = vld [vmem:[%s0 + $0xf4] sm:$0xf]
  %v77 = vld [vmem:[%s0 + $0xf8] sm:$0xf]
  %v78 = vld [vmem:[%s0 + $0xfc] sm:$0xf]
  %v79 = vld [vmem:[%s1] sm:$0xf]
  %v80 = vld [vmem:[%s1 + $0x4] sm:$0xf]
  %v81 = vld [vmem:[%s1 + $0x8] sm:$0xf]
  %v82 = vld [vmem:[%s1 + $0xc] sm:$0xf]
  %v83 = vld [vmem:[%s1 + $0x10] sm:$0xf]
  %v84 = vld [vmem:[%s1 + $0x14] sm:$0xf]
  %v85 = vld [vmem:[%s1 + $0x18] sm:$0xf]
  %v86 = vld [vmem:[%s1 + $0x1c] sm:$0xf]
  %v87 = vld [vmem:[%s1 + $0x20] sm:$0xf]
  %v88 = vld [vmem:[%s1 + $0x24] sm:$0xf]
  %v89 = vld [vmem:[%s1 + $0x28] sm:$0x1]
  %v90 = vld [vmem:[%s2] sm:$0x1]
  %v92 = vlaneseq
  %v93 = vshrl.u32 %v92, 7
  %v94 = vsub.s32 0, %v93
  %v95 = vrot.slane %v90, %v94
  %v161 = vunpack.c.l.b16 %v15
  %v162 = vunpack.c.l.b16 %v16
  %v163 = vunpack.c.l.b16 %v17
  %v164 = vunpack.c.l.b16 %v18
  %v165 = vunpack.c.l.b16 %v19
  %v166 = vunpack.c.l.b16 %v20
  %v167 = vunpack.c.l.b16 %v21
  %v168 = vunpack.c.l.b16 %v22
  %v169 = vunpack.c.l.b16 %v23
  %v170 = vunpack.c.l.b16 %v24
  %v171 = vunpack.c.l.b16 %v25
  %v172 = vunpack.c.l.b16 %v26
  %v173 = vunpack.c.l.b16 %v27
  %v174 = vunpack.c.l.b16 %v28
  %v175 = vunpack.c.l.b16 %v29
  %v176 = vunpack.c.l.b16 %v30
  %v177 = vunpack.c.l.b16 %v31
  %v178 = vunpack.c.l.b16 %v32
  %v179 = vunpack.c.l.b16 %v33
  %v180 = vunpack.c.l.b16 %v34
  %v181 = vunpack.c.l.b16 %v35
  %v182 = vunpack.c.l.b16 %v36
  %v183 = vunpack.c.l.b16 %v37
  %v184 = vunpack.c.l.b16 %v38
  %v185 = vunpack.c.l.b16 %v39
  %v186 = vunpack.c.l.b16 %v40
  %v187 = vunpack.c.l.b16 %v41
  %v188 = vunpack.c.l.b16 %v42
  %v189 = vunpack.c.l.b16 %v43
  %v190 = vunpack.c.l.b16 %v44
  %v191 = vunpack.c.l.b16 %v45
  %v192 = vunpack.c.l.b16 %v46
  %v193 = vunpack.c.l.b16 %v47
  %v194 = vunpack.c.l.b16 %v48
  %v195 = vunpack.c.l.b16 %v49
  %v196 = vunpack.c.l.b16 %v50
  %v197 = vunpack.c.l.b16 %v51
  %v198 = vunpack.c.l.b16 %v52
  %v199 = vunpack.c.l.b16 %v53
  %v200 = vunpack.c.l.b16 %v54
  %v201 = vunpack.c.l.b16 %v55
  %v202 = vunpack.c.l.b16 %v56
  %v203 = vunpack.c.l.b16 %v57
  %v204 = vunpack.c.l.b16 %v58
  %v205 = vunpack.c.l.b16 %v59
  %v206 = vunpack.c.l.b16 %v60
  %v207 = vunpack.c.l.b16 %v61
  %v208 = vunpack.c.l.b16 %v62
  %v209 = vunpack.c.l.b16 %v63
  %v210 = vunpack.c.l.b16 %v64
  %v211 = vunpack.c.l.b16 %v65
  %v212 = vunpack.c.l.b16 %v66
  %v213 = vunpack.c.l.b16 %v67
  %v214 = vunpack.c.l.b16 %v68
  %v215 = vunpack.c.l.b16 %v69
  %v216 = vunpack.c.l.b16 %v70
  %v217 = vunpack.c.l.b16 %v71
  %v218 = vunpack.c.l.b16 %v72
  %v219 = vunpack.c.l.b16 %v73
  %v220 = vunpack.c.l.b16 %v74
  %v221 = vunpack.c.l.b16 %v75
  %v222 = vunpack.c.l.b16 %v76
  %v223 = vunpack.c.l.b16 %v77
  %v224 = vunpack.c.l.b16 %v78
  %v225 = vpack.c.b16 %v162, %v161
  %v226 = vpack.c.b16 %v164, %v163
  %v227 = vpack.c.b16 %v166, %v165
  %v228 = vpack.c.b16 %v168, %v167
  %v229 = vpack.c.b16 %v170, %v169
  %v230 = vpack.c.b16 %v172, %v171
  %v231 = vpack.c.b16 %v174, %v173
  %v232 = vpack.c.b16 %v176, %v175
  %v233 = vpack.c.b16 %v178, %v177
  %v234 = vpack.c.b16 %v180, %v179
  %v235 = vpack.c.b16 %v182, %v181
  %v236 = vpack.c.b16 %v184, %v183
  %v237 = vpack.c.b16 %v186, %v185
  %v238 = vpack.c.b16 %v188, %v187
  %v239 = vpack.c.b16 %v190, %v189
  %v240 = vpack.c.b16 %v192, %v191
  %v241 = vpack.c.b16 %v194, %v193
  %v242 = vpack.c.b16 %v196, %v195
  %v243 = vpack.c.b16 %v198, %v197
  %v244 = vpack.c.b16 %v200, %v199
  %v245 = vpack.c.b16 %v202, %v201
  %v246 = vpack.c.b16 %v204, %v203
  %v247 = vpack.c.b16 %v206, %v205
  %v248 = vpack.c.b16 %v208, %v207
  %v249 = vpack.c.b16 %v210, %v209
  %v250 = vpack.c.b16 %v212, %v211
  %v251 = vpack.c.b16 %v214, %v213
  %v252 = vpack.c.b16 %v216, %v215
  %v253 = vpack.c.b16 %v218, %v217
  %v254 = vpack.c.b16 %v220, %v219
  %v255 = vpack.c.b16 %v222, %v221
  %v256 = vpack.c.b16 %v224, %v223
  %v268 = vunpack.c.l.b16 %v79
  %v269 = vunpack.c.l.b16 %v80
  %v270 = vunpack.c.l.b16 %v81
  %v271 = vunpack.c.l.b16 %v82
  %v272 = vunpack.c.l.b16 %v83
  %v273 = vunpack.c.l.b16 %v84
  %v274 = vunpack.c.l.b16 %v85
  %v275 = vunpack.c.l.b16 %v86
  %v276 = vunpack.c.l.b16 %v87
  %v277 = vunpack.c.l.b16 %v88
  %v278 = vunpack.c.l.b16 %v89
  %v279 = vpack.c.b16 %v269, %v268
  %v280 = vpack.c.b16 %v271, %v270
  %v281 = vpack.c.b16 %v273, %v272
  %v282 = vpack.c.b16 %v275, %v274
  %v283 = vpack.c.b16 %v277, %v276
  %v284 = vpack.c.b16 %v278, %v278
  %vm290 = vcmask 662528
  %v292 = vsel %vm290, %v225, 0
  %v295 = vsel %vm290, %v226, 0
  %v298 = vsel %vm290, %v227, 0
  %v301 = vsel %vm290, %v228, 0
  %v304 = vsel %vm290, %v229, 0
  %v307 = vsel %vm290, %v230, 0
  %v310 = vsel %vm290, %v231, 0
  %v313 = vsel %vm290, %v232, 0
  %v316 = vsel %vm290, %v233, 0
  %v319 = vsel %vm290, %v234, 0
  %v322 = vsel %vm290, %v235, 0
  %v325 = vsel %vm290, %v236, 0
  %v328 = vsel %vm290, %v237, 0
  %v331 = vsel %vm290, %v238, 0
  %v334 = vsel %vm290, %v239, 0
  %v337 = vsel %vm290, %v240, 0
  %v340 = vsel %vm290, %v241, 0
  %v343 = vsel %vm290, %v242, 0
  %v346 = vsel %vm290, %v243, 0
  %v349 = vsel %vm290, %v244, 0
  %v352 = vsel %vm290, %v245, 0
  %v355 = vsel %vm290, %v246, 0
  %v358 = vsel %vm290, %v247, 0
  %v361 = vsel %vm290, %v248, 0
  %v364 = vsel %vm290, %v249, 0
  %v367 = vsel %vm290, %v250, 0
  %v370 = vsel %vm290, %v251, 0
  %v373 = vsel %vm290, %v252, 0
  %v376 = vsel %vm290, %v253, 0
  %v379 = vsel %vm290, %v254, 0
  %v382 = vsel %vm290, %v255, 0
  %v385 = vsel %vm290, %v256, 0
  %vm387 = vcmask 1040384
  %v388 = vsel 0, 4294967295, 65535
  %v389 = vsel %vm387, %v388, 0
  %v391 = vand.u32 %v284, %v389
  %393 = vmatprep.subr.bf16.mxu0 0
  %394 = vmatpush1.bf16.msra.mxu0 %v279
  %395 = vmatprep.subr.bf16.mxu0 0
  %396 = vmatpush1.bf16.msra.mxu0 %v280
  %397 = vmatprep.subr.bf16.mxu0 0
  %398 = vmatpush1.bf16.msra.mxu0 %v281
  %399 = vmatprep.subr.bf16.mxu0 0
  %400 = vmatpush1.bf16.msra.mxu0 %v282
  %401 = vmatprep.subr.bf16.mxu0 0
  %402 = vmatpush1.bf16.msra.mxu0 %v283
  %403 = vmatprep.subr.bf16.mxu0 0
  %404 = vmatpush1.bf16.msra.mxu0 %v391
  %405 = vmatprep.subr.bf16.mxu0 0
  %406 = vmatpush1.bf16.msra.mxu0 0
  %407 = vmatprep.subr.bf16.mxu0 0
  %408 = vmatpush1.bf16.msra.mxu0 0
  %409 = vmatprep.subr.bf16.mxu0 0
  %410 = vmatpush1.bf16.msra.mxu0 0
  %411 = vmatprep.subr.bf16.mxu0 0
  %412 = vmatpush1.bf16.msra.mxu0 0
  %413 = vmatprep.subr.bf16.mxu0 0
  %414 = vmatpush1.bf16.msra.mxu0 0
  %415 = vmatprep.subr.bf16.mxu0 0
  %416 = vmatpush1.bf16.msra.mxu0 0
  %417 = vmatprep.subr.bf16.mxu0 0
  %418 = vmatpush1.bf16.msra.mxu0 0
  %419 = vmatprep.subr.bf16.mxu0 0
  %420 = vmatpush1.bf16.msra.mxu0 0
  %421 = vmatprep.subr.bf16.mxu0 0
  %422 = vmatpush1.bf16.msra.mxu0 0
  %423 = vmatprep.subr.bf16.mxu0 0
  %424 = vmatpush1.bf16.msra.mxu0 0
  %425 = vmatprep.mubr.bf16.mxu0 0
  %426 = vmatmul.mubr.bf16.gmra.mrb[0].mxu0 %v292
  %v427 = vpop.f32.mrb[0].mxu0
  %v428 = vadd.f32 %v95, %v427
  %v429 = vpop.f32.mrb[0].mxu0
  %v430 = vpop.f32.mrb[0].mxu0
  %v431 = vadd.f32 %v95, %v430
  %v432 = vpop.f32.mrb[0].mxu0
  %433 = vmatprep.mubr.bf16.mxu0 0
  %434 = vmatmul.mubr.bf16.gmra.mrb[0].mxu0 %v295
  %v435 = vpop.f32.mrb[0].mxu0
  %v436 = vadd.f32 %v95, %v435
  %v437 = vpop.f32.mrb[0].mxu0
  %v438 = vpop.f32.mrb[0].mxu0
  %v439 = vadd.f32 %v95, %v438
  %v440 = vpop.f32.mrb[0].mxu0
  %441 = vmatprep.mubr.bf16.mxu0 0
  %442 = vmatmul.mubr.bf16.gmra.mrb[0].mxu0 %v298
  %v443 = vpop.f32.mrb[0].mxu0
  %v444 = vadd.f32 %v95, %v443
  %v445 = vpop.f32.mrb[0].mxu0
  %v446 = vpop.f32.mrb[0].mxu0
  %v447 = vadd.f32 %v95, %v446
  %v448 = vpop.f32.mrb[0].mxu0
  %449 = vmatprep.mubr.bf16.mxu0 0
  %450 = vmatmul.mubr.bf16.gmra.mrb[0].mxu0 %v301
  %v451 = vpop.f32.mrb[0].mxu0
  %v452 = vadd.f32 %v95, %v451
  %v453 = vpop.f32.mrb[0].mxu0
  %v454 = vpop.f32.mrb[0].mxu0
  %v455 = vadd.f32 %v95, %v454
  %v456 = vpop.f32.mrb[0].mxu0
  %457 = vmatprep.mubr.bf16.mxu0 0
  %458 = vmatmul.mubr.bf16.gmra.mrb[0].mxu0 %v304
  %v459 = vpop.f32.mrb[0].mxu0
  %v460 = vadd.f32 %v95, %v459
  %v461 = vpop.f32.mrb[0].mxu0
  %v462 = vpop.f32.mrb[0].mxu0
  %v463 = vadd.f32 %v95, %v462
  %v464 = vpop.f32.mrb[0].mxu0
  %465 = vmatprep.mubr.bf16.mxu0 0
  %466 = vmatmul.mubr.bf16.gmra.mrb[0].mxu0 %v307
  %v467 = vpop.f32.mrb[0].mxu0
  %v468 = vadd.f32 %v95, %v467
  %v469 = vpop.f32.mrb[0].mxu0
  %v470 = vpop.f32.mrb[0].mxu0
  %v471 = vadd.f32 %v95, %v470
  %v472 = vpop.f32.mrb[0].mxu0
  %473 = vmatprep.mubr.bf16.mxu0 0
  %474 = vmatmul.mubr.bf16.gmra.mrb[0].mxu0 %v310
  %v475 = vpop.f32.mrb[0].mxu0
  %v476 = vadd.f32 %v95, %v475
  %v477 = vpop.f32.mrb[0].mxu0
  %v478 = vpop.f32.mrb[0].mxu0
  %v479 = vadd.f32 %v95, %v478
  %v480 = vpop.f32.mrb[0].mxu0
  %481 = vmatprep.mubr.bf16.mxu0 0
  %482 = vmatmul.mubr.bf16.gmra.mrb[0].mxu0 %v313
  %v483 = vpop.f32.mrb[0].mxu0
  %v484 = vadd.f32 %v95, %v483
  %v485 = vpop.f32.mrb[0].mxu0
  %v486 = vpop.f32.mrb[0].mxu0
  %v487 = vadd.f32 %v95, %v486
  %v488 = vpop.f32.mrb[0].mxu0
  %489 = vmatprep.mubr.bf16.mxu0 0
  %490 = vmatmul.mubr.bf16.gmra.mrb[0].mxu0 %v316
  %v491 = vpop.f32.mrb[0].mxu0
  %v492 = vadd.f32 %v95, %v491
  %v493 = vpop.f32.mrb[0].mxu0
  %v494 = vpop.f32.mrb[0].mxu0
  %v495 = vadd.f32 %v95, %v494
  %v496 = vpop.f32.mrb[0].mxu0
  %497 = vmatprep.mubr.bf16.mxu0 0
  %498 = vmatmul.mubr.bf16.gmra.mrb[0].mxu0 %v319
  %v499 = vpop.f32.mrb[0].mxu0
  %v500 = vadd.f32 %v95, %v499
  %v501 = vpop.f32.mrb[0].mxu0
  %v502 = vpop.f32.mrb[0].mxu0
  %v503 = vadd.f32 %v95, %v502
  %v504 = vpop.f32.mrb[0].mxu0
  %505 = vmatprep.mubr.bf16.mxu0 0
  %506 = vmatmul.mubr.bf16.gmra.mrb[0].mxu0 %v322
  %v507 = vpop.f32.mrb[0].mxu0
  %v508 = vadd.f32 %v95, %v507
  %v509 = vpop.f32.mrb[0].mxu0
  %v510 = vpop.f32.mrb[0].mxu0
  %v511 = vadd.f32 %v95, %v510
  %v512 = vpop.f32.mrb[0].mxu0
  %513 = vmatprep.mubr.bf16.mxu0 0
  %514 = vmatmul.mubr.bf16.gmra.mrb[0].mxu0 %v325
  %v515 = vpop.f32.mrb[0].mxu0
  %v516 = vadd.f32 %v95, %v515
  %v517 = vpop.f32.mrb[0].mxu0
  %v518 = vpop.f32.mrb[0].mxu0
  %v519 = vadd.f32 %v95, %v518
  %v520 = vpop.f32.mrb[0].mxu0
  %521 = vmatprep.mubr.bf16.mxu0 0
  %522 = vmatmul.mubr.bf16.gmra.mrb[0].mxu0 %v328
  %v523 = vpop.f32.mrb[0].mxu0
  %v524 = vadd.f32 %v95, %v523
  %v525 = vpop.f32.mrb[0].mxu0
  %v526 = vpop.f32.mrb[0].mxu0
  %v527 = vadd.f32 %v95, %v526
  %v528 = vpop.f32.mrb[0].mxu0
  %529 = vmatprep.mubr.bf16.mxu0 0
  %530 = vmatmul.mubr.bf16.gmra.mrb[0].mxu0 %v331
  %v531 = vpop.f32.mrb[0].mxu0
  %v532 = vadd.f32 %v95, %v531
  %v533 = vpop.f32.mrb[0].mxu0
  %v534 = vpop.f32.mrb[0].mxu0
  %v535 = vadd.f32 %v95, %v534
  %v536 = vpop.f32.mrb[0].mxu0
  %537 = vmatprep.mubr.bf16.mxu0 0
  %538 = vmatmul.mubr.bf16.gmra.mrb[0].mxu0 %v334
  %v539 = vpop.f32.mrb[0].mxu0
  %v540 = vadd.f32 %v95, %v539
  %v541 = vpop.f32.mrb[0].mxu0
  %v542 = vpop.f32.mrb[0].mxu0
  %v543 = vadd.f32 %v95, %v542
  %v544 = vpop.f32.mrb[0].mxu0
  %545 = vmatprep.mubr.bf16.mxu0 0
  %546 = vmatmul.mubr.bf16.gmra.mrb[0].mxu0 %v337
  %v547 = vpop.f32.mrb[0].mxu0
  %v548 = vadd.f32 %v95, %v547
  %v549 = vpop.f32.mrb[0].mxu0
  %v550 = vpop.f32.mrb[0].mxu0
  %v551 = vadd.f32 %v95, %v550
  %v552 = vpop.f32.mrb[0].mxu0
  %553 = vmatprep.mubr.bf16.mxu0 0
  %554 = vmatmul.mubr.bf16.gmra.mrb[0].mxu0 %v340
  %v555 = vpop.f32.mrb[0].mxu0
  %v556 = vadd.f32 %v95, %v555
  %v557 = vpop.f32.mrb[0].mxu0
  %v558 = vpop.f32.mrb[0].mxu0
  %v559 = vadd.f32 %v95, %v558
  %v560 = vpop.f32.mrb[0].mxu0
  %561 = vmatprep.mubr.bf16.mxu0 0
  %562 = vmatmul.mubr.bf16.gmra.mrb[0].mxu0 %v343
  %v563 = vpop.f32.mrb[0].mxu0
  %v564 = vadd.f32 %v95, %v563
  %v565 = vpop.f32.mrb[0].mxu0
  %v566 = vpop.f32.mrb[0].mxu0
  %v567 = vadd.f32 %v95, %v566
  %v568 = vpop.f32.mrb[0].mxu0
  %569 = vmatprep.mubr.bf16.mxu0 0
  %570 = vmatmul.mubr.bf16.gmra.mrb[0].mxu0 %v346
  %v571 = vpop.f32.mrb[0].mxu0
  %v572 = vadd.f32 %v95, %v571
  %v573 = vpop.f32.mrb[0].mxu0
  %v574 = vpop.f32.mrb[0].mxu0
  %v575 = vadd.f32 %v95, %v574
  %v576 = vpop.f32.mrb[0].mxu0
  %577 = vmatprep.mubr.bf16.mxu0 0
  %578 = vmatmul.mubr.bf16.gmra.mrb[0].mxu0 %v349
  %v579 = vpop.f32.mrb[0].mxu0
  %v580 = vadd.f32 %v95, %v579
  %v581 = vpop.f32.mrb[0].mxu0
  %v582 = vpop.f32.mrb[0].mxu0
  %v583 = vadd.f32 %v95, %v582
  %v584 = vpop.f32.mrb[0].mxu0
  %585 = vmatprep.mubr.bf16.mxu0 0
  %586 = vmatmul.mubr.bf16.gmra.mrb[0].mxu0 %v352
  %v587 = vpop.f32.mrb[0].mxu0
  %v588 = vadd.f32 %v95, %v587
  %v589 = vpop.f32.mrb[0].mxu0
  %v590 = vpop.f32.mrb[0].mxu0
  %v591 = vadd.f32 %v95, %v590
  %v592 = vpop.f32.mrb[0].mxu0
  %593 = vmatprep.mubr.bf16.mxu0 0
  %594 = vmatmul.mubr.bf16.gmra.mrb[0].mxu0 %v355
  %v595 = vpop.f32.mrb[0].mxu0
  %v596 = vadd.f32 %v95, %v595
  %v597 = vpop.f32.mrb[0].mxu0
  %v598 = vpop.f32.mrb[0].mxu0
  %v599 = vadd.f32 %v95, %v598
  %v600 = vpop.f32.mrb[0].mxu0
  %601 = vmatprep.mubr.bf16.mxu0 0
  %602 = vmatmul.mubr.bf16.gmra.mrb[0].mxu0 %v358
  %v603 = vpop.f32.mrb[0].mxu0
  %v604 = vadd.f32 %v95, %v603
  %v605 = vpop.f32.mrb[0].mxu0
  %v606 = vpop.f32.mrb[0].mxu0
  %v607 = vadd.f32 %v95, %v606
  %v608 = vpop.f32.mrb[0].mxu0
  %609 = vmatprep.mubr.bf16.mxu0 0
  %610 = vmatmul.mubr.bf16.gmra.mrb[0].mxu0 %v361
  %v611 = vpop.f32.mrb[0].mxu0
  %v612 = vadd.f32 %v95, %v611
  %v613 = vpop.f32.mrb[0].mxu0
  %v614 = vpop.f32.mrb[0].mxu0
  %v615 = vadd.f32 %v95, %v614
  %v616 = vpop.f32.mrb[0].mxu0
  %617 = vmatprep.mubr.bf16.mxu0 0
  %618 = vmatmul.mubr.bf16.gmra.mrb[0].mxu0 %v364
  %v619 = vpop.f32.mrb[0].mxu0
  %v620 = vadd.f32 %v95, %v619
  %v621 = vpop.f32.mrb[0].mxu0
  %v622 = vpop.f32.mrb[0].mxu0
  %v623 = vadd.f32 %v95, %v622
  %v624 = vpop.f32.mrb[0].mxu0
  %625 = vmatprep.mubr.bf16.mxu0 0
  %626 = vmatmul.mubr.bf16.gmra.mrb[0].mxu0 %v367
  %v627 = vpop.f32.mrb[0].mxu0
  %v628 = vadd.f32 %v95, %v627
  %v629 = vpop.f32.mrb[0].mxu0
  %v630 = vpop.f32.mrb[0].mxu0
  %v631 = vadd.f32 %v95, %v630
  %v632 = vpop.f32.mrb[0].mxu0
  %633 = vmatprep.mubr.bf16.mxu0 0
  %634 = vmatmul.mubr.bf16.gmra.mrb[0].mxu0 %v370
  %v635 = vpop.f32.mrb[0].mxu0
  %v636 = vadd.f32 %v95, %v635
  %v637 = vpop.f32.mrb[0].mxu0
  %v638 = vpop.f32.mrb[0].mxu0
  %v639 = vadd.f32 %v95, %v638
  %v640 = vpop.f32.mrb[0].mxu0
  %641 = vmatprep.mubr.bf16.mxu0 0
  %642 = vmatmul.mubr.bf16.gmra.mrb[0].mxu0 %v373
  %v643 = vpop.f32.mrb[0].mxu0
  %v644 = vadd.f32 %v95, %v643
  %v645 = vpop.f32.mrb[0].mxu0
  %v646 = vpop.f32.mrb[0].mxu0
  %v647 = vadd.f32 %v95, %v646
  %v648 = vpop.f32.mrb[0].mxu0
  %649 = vmatprep.mubr.bf16.mxu0 0
  %650 = vmatmul.mubr.bf16.gmra.mrb[0].mxu0 %v376
  %v651 = vpop.f32.mrb[0].mxu0
  %v652 = vadd.f32 %v95, %v651
  %v653 = vpop.f32.mrb[0].mxu0
  %v654 = vpop.f32.mrb[0].mxu0
  %v655 = vadd.f32 %v95, %v654
  %v656 = vpop.f32.mrb[0].mxu0
  %657 = vmatprep.mubr.bf16.mxu0 0
  %658 = vmatmul.mubr.bf16.gmra.mrb[0].mxu0 %v379
  %v659 = vpop.f32.mrb[0].mxu0
  %v660 = vadd.f32 %v95, %v659
  %v661 = vpop.f32.mrb[0].mxu0
  %v662 = vpop.f32.mrb[0].mxu0
  %v663 = vadd.f32 %v95, %v662
  %v664 = vpop.f32.mrb[0].mxu0
  %665 = vmatprep.mubr.bf16.mxu0 0
  %666 = vmatmul.mubr.bf16.gmra.mrb[0].mxu0 %v382
  %v667 = vpop.f32.mrb[0].mxu0
  %v668 = vadd.f32 %v95, %v667
  %v669 = vpop.f32.mrb[0].mxu0
  %v670 = vpop.f32.mrb[0].mxu0
  %v671 = vadd.f32 %v95, %v670
  %v672 = vpop.f32.mrb[0].mxu0
  %673 = vmatprep.mubr.bf16.mxu0 0
  %674 = vmatmul.mubr.bf16.gmra.mrb[0].mxu0 %v385
  %v675 = vpop.f32.mrb[0].mxu0
  %v676 = vadd.f32 %v95, %v675
  %v677 = vpop.f32.mrb[0].mxu0
  %v678 = vpop.f32.mrb[0].mxu0
  %v679 = vadd.f32 %v95, %v678
  %v680 = vpop.f32.mrb[0].mxu0
  %681 = vdwg.mxu0
  %v682 = vpack.c.bf16 %v431, %v428
  %v683 = vpack.c.bf16 %v439, %v436
  %v684 = vpack.c.bf16 %v447, %v444
  %v685 = vpack.c.bf16 %v455, %v452
  %v686 = vpack.c.bf16 %v463, %v460
  %v687 = vpack.c.bf16 %v471, %v468
  %v688 = vpack.c.bf16 %v479, %v476
  %v689 = vpack.c.bf16 %v487, %v484
  %v690 = vpack.c.bf16 %v495, %v492
  %v691 = vpack.c.bf16 %v503, %v500
  %v692 = vpack.c.bf16 %v511, %v508
  %v693 = vpack.c.bf16 %v519, %v516
  %v694 = vpack.c.bf16 %v527, %v524
  %v695 = vpack.c.bf16 %v535, %v532
  %v696 = vpack.c.bf16 %v543, %v540
  %v697 = vpack.c.bf16 %v551, %v548
  %v698 = vpack.c.bf16 %v559, %v556
  %v699 = vpack.c.bf16 %v567, %v564
  %v700 = vpack.c.bf16 %v575, %v572
  %v701 = vpack.c.bf16 %v583, %v580
  %v702 = vpack.c.bf16 %v591, %v588
  %v703 = vpack.c.bf16 %v599, %v596
  %v704 = vpack.c.bf16 %v607, %v604
  %v705 = vpack.c.bf16 %v615, %v612
  %v706 = vpack.c.bf16 %v623, %v620
  %v707 = vpack.c.bf16 %v631, %v628
  %v708 = vpack.c.bf16 %v639, %v636
  %v709 = vpack.c.bf16 %v647, %v644
  %v710 = vpack.c.bf16 %v655, %v652
  %v711 = vpack.c.bf16 %v663, %v660
  %v712 = vpack.c.bf16 %v671, %v668
  %v713 = vpack.c.bf16 %v679, %v676
  %v746 = vunpack.c.l.b16 %v682
  %v747 = vunpack.c.h.b16 %v682
  %v748 = vunpack.c.l.b16 %v683
  %v749 = vunpack.c.h.b16 %v683
  %v750 = vunpack.c.l.b16 %v684
  %v751 = vunpack.c.h.b16 %v684
  %v752 = vunpack.c.l.b16 %v685
  %v753 = vunpack.c.h.b16 %v685
  %v754 = vunpack.c.l.b16 %v686
  %v755 = vunpack.c.h.b16 %v686
  %v756 = vunpack.c.l.b16 %v687
  %v757 = vunpack.c.h.b16 %v687
  %v758 = vunpack.c.l.b16 %v688
  %v759 = vunpack.c.h.b16 %v688
  %v760 = vunpack.c.l.b16 %v689
  %v761 = vunpack.c.h.b16 %v689
  %v762 = vunpack.c.l.b16 %v690
  %v763 = vunpack.c.h.b16 %v690
  %v764 = vunpack.c.l.b16 %v691
  %v765 = vunpack.c.h.b16 %v691
  %v766 = vunpack.c.l.b16 %v692
  %v767 = vunpack.c.h.b16 %v692
  %v768 = vunpack.c.l.b16 %v693
  %v769 = vunpack.c.h.b16 %v693
  %v770 = vunpack.c.l.b16 %v694
  %v771 = vunpack.c.h.b16 %v694
  %v772 = vunpack.c.l.b16 %v695
  %v773 = vunpack.c.h.b16 %v695
  %v774 = vunpack.c.l.b16 %v696
  %v775 = vunpack.c.h.b16 %v696
  %v776 = vunpack.c.l.b16 %v697
  %v777 = vunpack.c.h.b16 %v697
  %v778 = vunpack.c.l.b16 %v698
  %v779 = vunpack.c.h.b16 %v698
  %v780 = vunpack.c.l.b16 %v699
  %v781 = vunpack.c.h.b16 %v699
  %v782 = vunpack.c.l.b16 %v700
  %v783 = vunpack.c.h.b16 %v700
  %v784 = vunpack.c.l.b16 %v701
  %v785 = vunpack.c.h.b16 %v701
  %v786 = vunpack.c.l.b16 %v702
  %v787 = vunpack.c.h.b16 %v702
  %v788 = vunpack.c.l.b16 %v703
  %v789 = vunpack.c.h.b16 %v703
  %v790 = vunpack.c.l.b16 %v704
  %v791 = vunpack.c.h.b16 %v704
  %v792 = vunpack.c.l.b16 %v705
  %v793 = vunpack.c.h.b16 %v705
  %v794 = vunpack.c.l.b16 %v706
  %v795 = vunpack.c.h.b16 %v706
  %v796 = vunpack.c.l.b16 %v707
  %v797 = vunpack.c.h.b16 %v707
  %v798 = vunpack.c.l.b16 %v708
  %v799 = vunpack.c.h.b16 %v708
  %v800 = vunpack.c.l.b16 %v709
  %v801 = vunpack.c.h.b16 %v709
  %v802 = vunpack.c.l.b16 %v710
  %v803 = vunpack.c.h.b16 %v710
  %v804 = vunpack.c.l.b16 %v711
  %v805 = vunpack.c.h.b16 %v711
  %v806 = vunpack.c.l.b16 %v712
  %v807 = vunpack.c.h.b16 %v712
  %v808 = vunpack.c.l.b16 %v713
  %v809 = vunpack.c.h.b16 %v713
  %v810 = vpack.c.b16 %v746, %v746
  %v811 = vpack.c.b16 %v747, %v747
  %v812 = vpack.c.b16 %v748, %v748
  %v813 = vpack.c.b16 %v749, %v749
  %v814 = vpack.c.b16 %v750, %v750
  %v815 = vpack.c.b16 %v751, %v751
  %v816 = vpack.c.b16 %v752, %v752
  %v817 = vpack.c.b16 %v753, %v753
  %v818 = vpack.c.b16 %v754, %v754
  %v819 = vpack.c.b16 %v755, %v755
  %v820 = vpack.c.b16 %v756, %v756
  %v821 = vpack.c.b16 %v757, %v757
  %v822 = vpack.c.b16 %v758, %v758
  %v823 = vpack.c.b16 %v759, %v759
  %v824 = vpack.c.b16 %v760, %v760
  %v825 = vpack.c.b16 %v761, %v761
  %v826 = vpack.c.b16 %v762, %v762
  %v827 = vpack.c.b16 %v763, %v763
  %v828 = vpack.c.b16 %v764, %v764
  %v829 = vpack.c.b16 %v765, %v765
  %v830 = vpack.c.b16 %v766, %v766
  %v831 = vpack.c.b16 %v767, %v767
  %v832 = vpack.c.b16 %v768, %v768
  %v833 = vpack.c.b16 %v769, %v769
  %v834 = vpack.c.b16 %v770, %v770
  %v835 = vpack.c.b16 %v771, %v771
  %v836 = vpack.c.b16 %v772, %v772
  %v837 = vpack.c.b16 %v773, %v773
  %v838 = vpack.c.b16 %v774, %v774
  %v839 = vpack.c.b16 %v775, %v775
  %v840 = vpack.c.b16 %v776, %v776
  %v841 = vpack.c.b16 %v777, %v777
  %v842 = vpack.c.b16 %v778, %v778
  %v843 = vpack.c.b16 %v779, %v779
  %v844 = vpack.c.b16 %v780, %v780
  %v845 = vpack.c.b16 %v781, %v781
  %v846 = vpack.c.b16 %v782, %v782
  %v847 = vpack.c.b16 %v783, %v783
  %v848 = vpack.c.b16 %v784, %v784
  %v849 = vpack.c.b16 %v785, %v785
  %v850 = vpack.c.b16 %v786, %v786
  %v851 = vpack.c.b16 %v787, %v787
  %v852 = vpack.c.b16 %v788, %v788
  %v853 = vpack.c.b16 %v789, %v789
  %v854 = vpack.c.b16 %v790, %v790
  %v855 = vpack.c.b16 %v791, %v791
  %v856 = vpack.c.b16 %v792, %v792
  %v857 = vpack.c.b16 %v793, %v793
  %v858 = vpack.c.b16 %v794, %v794
  %v859 = vpack.c.b16 %v795, %v795
  %v860 = vpack.c.b16 %v796, %v796
  %v861 = vpack.c.b16 %v797, %v797
  %v862 = vpack.c.b16 %v798, %v798
  %v863 = vpack.c.b16 %v799, %v799
  %v864 = vpack.c.b16 %v800, %v800
  %v865 = vpack.c.b16 %v801, %v801
  %v866 = vpack.c.b16 %v802, %v802
  %v867 = vpack.c.b16 %v803, %v803
  %v868 = vpack.c.b16 %v804, %v804
  %v869 = vpack.c.b16 %v805, %v805
  %v870 = vpack.c.b16 %v806, %v806
  %v871 = vpack.c.b16 %v807, %v807
  %v872 = vpack.c.b16 %v808, %v808
  %v873 = vpack.c.b16 %v809, %v809
  %vm938 = vcmask 3072
  %939 = vst.msk [vmem:[%s3] sm:$0xf] %vm938, %v810
  %940 = vst.msk [vmem:[%s3 + $0x4] sm:$0xf] %vm938, %v811
  %941 = vst.msk [vmem:[%s3 + $0x8] sm:$0xf] %vm938, %v812
  %942 = vst.msk [vmem:[%s3 + $0xc] sm:$0xf] %vm938, %v813
  %943 = vst.msk [vmem:[%s3 + $0x10] sm:$0xf] %vm938, %v814
  %944 = vst.msk [vmem:[%s3 + $0x14] sm:$0xf] %vm938, %v815
  %945 = vst.msk [vmem:[%s3 + $0x18] sm:$0xf] %vm938, %v816
  %946 = vst.msk [vmem:[%s3 + $0x1c] sm:$0xf] %vm938, %v817
  %947 = vst.msk [vmem:[%s3 + $0x20] sm:$0xf] %vm938, %v818
  %948 = vst.msk [vmem:[%s3 + $0x24] sm:$0xf] %vm938, %v819
  %949 = vst.msk [vmem:[%s3 + $0x28] sm:$0xf] %vm938, %v820
  %950 = vst.msk [vmem:[%s3 + $0x2c] sm:$0xf] %vm938, %v821
  %951 = vst.msk [vmem:[%s3 + $0x30] sm:$0xf] %vm938, %v822
  %952 = vst.msk [vmem:[%s3 + $0x34] sm:$0xf] %vm938, %v823
  %953 = vst.msk [vmem:[%s3 + $0x38] sm:$0xf] %vm938, %v824
  %954 = vst.msk [vmem:[%s3 + $0x3c] sm:$0xf] %vm938, %v825
  %955 = vst.msk [vmem:[%s3 + $0x40] sm:$0xf] %vm938, %v826
  %956 = vst.msk [vmem:[%s3 + $0x44] sm:$0xf] %vm938, %v827
  %957 = vst.msk [vmem:[%s3 + $0x48] sm:$0xf] %vm938, %v828
  %958 = vst.msk [vmem:[%s3 + $0x4c] sm:$0xf] %vm938, %v829
  %959 = vst.msk [vmem:[%s3 + $0x50] sm:$0xf] %vm938, %v830
  %960 = vst.msk [vmem:[%s3 + $0x54] sm:$0xf] %vm938, %v831
  %961 = vst.msk [vmem:[%s3 + $0x58] sm:$0xf] %vm938, %v832
  %962 = vst.msk [vmem:[%s3 + $0x5c] sm:$0xf] %vm938, %v833
  %963 = vst.msk [vmem:[%s3 + $0x60] sm:$0xf] %vm938, %v834
  %964 = vst.msk [vmem:[%s3 + $0x64] sm:$0xf] %vm938, %v835
  %965 = vst.msk [vmem:[%s3 + $0x68] sm:$0xf] %vm938, %v836
  %966 = vst.msk [vmem:[%s3 + $0x6c] sm:$0xf] %vm938, %v837
  %967 = vst.msk [vmem:[%s3 + $0x70] sm:$0xf] %vm938, %v838
  %968 = vst.msk [vmem:[%s3 + $0x74] sm:$0xf] %vm938, %v839
  %969 = vst.msk [vmem:[%s3 + $0x78] sm:$0xf] %vm938, %v840
  %970 = vst.msk [vmem:[%s3 + $0x7c] sm:$0xf] %vm938, %v841
  %971 = vst.msk [vmem:[%s3 + $0x80] sm:$0xf] %vm938, %v842
  %972 = vst.msk [vmem:[%s3 + $0x84] sm:$0xf] %vm938, %v843
  %973 = vst.msk [vmem:[%s3 + $0x88] sm:$0xf] %vm938, %v844
  %974 = vst.msk [vmem:[%s3 + $0x8c] sm:$0xf] %vm938, %v845
  %975 = vst.msk [vmem:[%s3 + $0x90] sm:$0xf] %vm938, %v846
  %976 = vst.msk [vmem:[%s3 + $0x94] sm:$0xf] %vm938, %v847
  %977 = vst.msk [vmem:[%s3 + $0x98] sm:$0xf] %vm938, %v848
  %978 = vst.msk [vmem:[%s3 + $0x9c] sm:$0xf] %vm938, %v849
  %979 = vst.msk [vmem:[%s3 + $0xa0] sm:$0xf] %vm938, %v850
  %980 = vst.msk [vmem:[%s3 + $0xa4] sm:$0xf] %vm938, %v851
  %981 = vst.msk [vmem:[%s3 + $0xa8] sm:$0xf] %vm938, %v852
  %982 = vst.msk [vmem:[%s3 + $0xac] sm:$0xf] %vm938, %v853
  %983 = vst.msk [vmem:[%s3 + $0xb0] sm:$0xf] %vm938, %v854
  %984 = vst.msk [vmem:[%s3 + $0xb4] sm:$0xf] %vm938, %v855
  %985 = vst.msk [vmem:[%s3 + $0xb8] sm:$0xf] %vm938, %v856
  %986 = vst.msk [vmem:[%s3 + $0xbc] sm:$0xf] %vm938, %v857
  %987 = vst.msk [vmem:[%s3 + $0xc0] sm:$0xf] %vm938, %v858
  %988 = vst.msk [vmem:[%s3 + $0xc4] sm:$0xf] %vm938, %v859
  %989 = vst.msk [vmem:[%s3 + $0xc8] sm:$0xf] %vm938, %v860
  %990 = vst.msk [vmem:[%s3 + $0xcc] sm:$0xf] %vm938, %v861
  %991 = vst.msk [vmem:[%s3 + $0xd0] sm:$0xf] %vm938, %v862
  %992 = vst.msk [vmem:[%s3 + $0xd4] sm:$0xf] %vm938, %v863
  %993 = vst.msk [vmem:[%s3 + $0xd8] sm:$0xf] %vm938, %v864
  %994 = vst.msk [vmem:[%s3 + $0xdc] sm:$0xf] %vm938, %v865
  %995 = vst.msk [vmem:[%s3 + $0xe0] sm:$0xf] %vm938, %v866
  %996 = vst.msk [vmem:[%s3 + $0xe4] sm:$0xf] %vm938, %v867
  %997 = vst.msk [vmem:[%s3 + $0xe8] sm:$0xf] %vm938, %v868
  %998 = vst.msk [vmem:[%s3 + $0xec] sm:$0xf] %vm938, %v869
  %999 = vst.msk [vmem:[%s3 + $0xf0] sm:$0xf] %vm938, %v870
  %1000 = vst.msk [vmem:[%s3 + $0xf4] sm:$0xf] %vm938, %v871
  %1001 = vst.msk [vmem:[%s3 + $0xf8] sm:$0xf] %vm938, %v872
  %1002 = vst.msk [vmem:[%s3 + $0xfc] sm:$0xf] %vm938, %v873
  // Predicated region
  $region14: #{_dp_as_dense.1} parent=0 // pred_check
    _
  $region15: #{_dp_as_dense.1} parent=0 // pred_check_branch
    %1004 = sbr.rel (0) target = $region17
  $region16: #{_dp_as_dense.1} parent=0 // pred_region
    _
  $region17: #{_dp_as_dense.1} parent=0 // pred_fallthru
    _
  // Predicated region
  $region18: #{_dp_as_dense.1} parent=0 // pred_check
    _
  $region19: #{_dp_as_dense.1} parent=0 // pred_check_branch
    %1006 = sbr.rel (0) target = $region21
  $region20: #{_dp_as_dense.1} parent=0 // pred_region
    _
  $region21: #{_dp_as_dense.1} parent=0 // pred_fallthru
    _

</llo_original>
